<compile_context>
chip_gen: v7x
topology: tpu7x:2x2x1
jax: 0.10.0
libtpu: 0.0.40
codegen_flags: <defaults>
</compile_context>

<pallas_src>
import math
from functools import lru_cache

import jax
import jax.numpy as jnp
from jax import lax
from jax.experimental import pallas as pl
from jax.experimental.pallas import tpu as pltpu


# ---------------------------------------------------------------------------
# Tiling / padding helpers
# ---------------------------------------------------------------------------
def _round_up(x: int, m: int) -> int:
    return (x + m - 1) // m * m


def _choose_tile(dim: int, pref: int, align: int):
    """Return (padded_dim, tile). `pref` must be a multiple of `align`."""
    if dim <= pref:
        p = _round_up(dim, align)
        return p, p
    return _round_up(dim, pref), pref


def _pad2d(x, rows: int, cols: int):
    r, c = x.shape
    if r == rows and c == cols:
        return x
    return jnp.pad(x, ((0, rows - r), (0, cols - c)))


@lru_cache(maxsize=1)
def _preferred_k_tile() -> int:
    # v7x has 64 MiB VMEM/TC vs 128 MiB on v5e/v6e: pick a smaller K tile there
    # so double-buffered (tm*tk + tk*tn) bf16 tiles stay well inside VMEM.
    try:
        vmem = int(pltpu.get_tpu_info().vmem_capacity_bytes)
    except Exception:
        vmem = 64 << 20
    return 4096 if vmem >= (96 << 20) else 2048


# Conservative scoped-VMEM ceiling: above the 16 MiB v5e default, comfortably
# below v7x's 64 MiB physical VMEM.  Actual per-call usage is a few MiB.
_VMEM_LIMIT_BYTES = 48 * 1024 * 1024


# ---------------------------------------------------------------------------
# Pallas kernels
# ---------------------------------------------------------------------------
def _matmul_kernel(x_ref, w_ref, o_ref, acc_ref):
    """One (tm, tk) x (tk, tn) MXU step of a K-tiled matmul, f32 accumulate."""
    k = pl.program_id(2)

    @pl.when(k == 0)
    def _():
        acc_ref[...] = jnp.zeros_like(acc_ref)

    acc_ref[...] += jnp.dot(x_ref[...], w_ref[...],
                            preferred_element_type=jnp.float32)

    @pl.when(k == pl.num_programs(2) - 1)
    def _():
        o_ref[...] = acc_ref[...].astype(o_ref.dtype)


def _logits_kernel(scale_ref, img_ref, txt_ref, o_ref, acc_ref):
    """exp(logit_scale) * img @ txt.T, D-tiled; scale applied at epilogue only."""
    k = pl.program_id(2)

    @pl.when(k == 0)
    def _():
        acc_ref[...] = jnp.zeros_like(acc_ref)

    # Contract the last (feature) dim of both operands directly; no explicit
    # transpose of the text tile (keeps the XLU out of the hot path).
    acc_ref[...] += lax.dot_general(
        img_ref[...], txt_ref[...],
        dimension_numbers=(((1,), (1,)), ((), ())),
        preferred_element_type=jnp.float32)

    @pl.when(k == pl.num_programs(2) - 1)
    def _():
        o_ref[...] = (jnp.exp(scale_ref[0]) * acc_ref[...]).astype(o_ref.dtype)


# ---------------------------------------------------------------------------
# Pallas wrappers
# ---------------------------------------------------------------------------
def pallas_proj(x, w):
    """Tiled matmul: x (M, K) @ w (K, N) -> (M, N) bf16, f32 accumulation."""
    M, K = x.shape
    K2, N = w.shape
    assert K == K2
    Mp, tm = _choose_tile(M, 256, 8)
    Np, tn = _choose_tile(N, 512, 128)
    Kp, tk = _choose_tile(K, _preferred_k_tile(), 128)

    xp = _pad2d(x.astype(jnp.bfloat16), Mp, Kp)
    wp = _pad2d(w.astype(jnp.bfloat16), Kp, Np)

    out = pl.pallas_call(
        _matmul_kernel,
        out_shape=jax.ShapeDtypeStruct((Mp, Np), jnp.bfloat16),
        grid_spec=pltpu.PrefetchScalarGridSpec(
            num_scalar_prefetch=0,
            grid=(Mp // tm, Np // tn, Kp // tk),
            in_specs=[
                pl.BlockSpec((tm, tk), lambda i, j, k: (i, k)),
                pl.BlockSpec((tk, tn), lambda i, j, k: (k, j)),
            ],
            out_specs=pl.BlockSpec((tm, tn), lambda i, j, k: (i, j)),
            scratch_shapes=[pltpu.VMEM((tm, tn), jnp.float32)],
        ),
        compiler_params=pltpu.CompilerParams(
            dimension_semantics=("parallel", "parallel", "arbitrary"),
            vmem_limit_bytes=_VMEM_LIMIT_BYTES,
        ),
    )(xp, wp)
    return out[:M, :N]


def pallas_clip_logits(logit_scale, image_features, text_features):
    """exp(logit_scale) * img_feat (B, D) @ txt_feat (Bt, D).T -> (B, Bt) f32."""
    B, D = image_features.shape
    Bt, D2 = text_features.shape
    assert D == D2
    Mp, tm = _choose_tile(B, 256, 8)
    Np, tn = _choose_tile(Bt, 256, 128)
    Dp, td = _choose_tile(D, 512, 128)

    img = _pad2d(image_features.astype(jnp.bfloat16), Mp, Dp)
    txt = _pad2d(text_features.astype(jnp.bfloat16), Np, Dp)
    scale_arr = jnp.reshape(logit_scale.astype(jnp.float32), (1,))

    out = pl.pallas_call(
        _logits_kernel,
        out_shape=jax.ShapeDtypeStruct((Mp, Np), jnp.float32),
        grid_spec=pltpu.PrefetchScalarGridSpec(
            num_scalar_prefetch=0,
            grid=(Mp // tm, Np // tn, Dp // td),
            in_specs=[
                pl.BlockSpec(memory_space=pltpu.MemorySpace.SMEM),
                pl.BlockSpec((tm, td), lambda i, j, k: (i, k)),
                pl.BlockSpec((tn, td), lambda i, j, k: (j, k)),
            ],
            out_specs=pl.BlockSpec((tm, tn), lambda i, j, k: (i, j)),
            scratch_shapes=[pltpu.VMEM((tm, tn), jnp.float32)],
        ),
        compiler_params=pltpu.CompilerParams(
            dimension_semantics=("parallel", "parallel", "arbitrary"),
            vmem_limit_bytes=_VMEM_LIMIT_BYTES,
        ),
    )(scale_arr, img, txt)
    return out[:B, :Bt]


# ---------------------------------------------------------------------------
# IPerceptor (concrete, deterministic parameters)
# ---------------------------------------------------------------------------
class Perceptor:
    def __init__(self, img_size: int, context_length: int, *,
                 in_channels: int, embed_dim: int,
                 vocab_size: int, token_dim: int):
        self.img_size = img_size
        self.context_length = context_length
        self.embed_dim = embed_dim

        # logit_scale = log(1 / 0.07), as in the PyTorch module.
        self.logit_scale = jnp.asarray(math.log(1.0 / 0.07), dtype=jnp.float32)

        key = jax.random.PRNGKey(0)
        k_img, k_emb, k_txt = jax.random.split(key, 3)

        img_in = in_channels * img_size * img_size
        self.w_img = (jax.random.normal(k_img, (img_in, embed_dim),
                                        dtype=jnp.float32)
                      / math.sqrt(img_in)).astype(jnp.bfloat16)
        self.token_embedding = (jax.random.normal(k_emb, (vocab_size, token_dim),
                                                  dtype=jnp.float32)
                                * 0.02)
        txt_in = context_length * token_dim
        self.w_txt = (jax.random.normal(k_txt, (txt_in, embed_dim),
                                        dtype=jnp.float32)
                      / math.sqrt(txt_in)).astype(jnp.bfloat16)

    # --- encoders (simple deterministic linear encoders; hot path in Pallas) ---
    def encode_image(self, image):
        # image: (B, C, H, W) NCHW -> flatten -> tiled Pallas projection matmul.
        B = image.shape[0]
        x = image.reshape(B, -1).astype(jnp.bfloat16)
        return pallas_proj(x, self.w_img)                      # (B, D) bf16

    def encode_text(self, text):
        # text: (B, L) int32 tokens -> embedding lookup (glue) -> Pallas matmul.
        emb = jnp.take(self.token_embedding, text, axis=0)     # (B, L, Dt)
        B = emb.shape[0]
        x = emb.reshape(B, -1).astype(jnp.bfloat16)            # (B, L*Dt)
        return pallas_proj(x, self.w_txt)                      # (B, D) bf16

    # --- IPerceptor.forward ---
    def __call__(self, image, text):
        image_features = self.encode_image(image)
        text_features = self.encode_text(text)
        # exp(logit_scale) * img @ txt.T, fused in a single tiled Pallas kernel.
        return pallas_clip_logits(self.logit_scale,
                                  image_features, text_features)


# ---------------------------------------------------------------------------
# Reference (pure JAX, same bf16 quantization points) for sanity checking
# ---------------------------------------------------------------------------
def reference_forward(model, image, text):
    B = image.shape[0]
    x_img = image.reshape(B, -1).astype(jnp.bfloat16)
    img_f = jnp.dot(x_img, model.w_img,
                    preferred_element_type=jnp.float32).astype(jnp.bfloat16)
    emb = jnp.take(model.token_embedding, text, axis=0).reshape(B, -1)
    txt_f = jnp.dot(emb.astype(jnp.bfloat16), model.w_txt,
                    preferred_element_type=jnp.float32).astype(jnp.bfloat16)
    sim = jnp.dot(img_f, txt_f.T, preferred_element_type=jnp.float32)
    return jnp.exp(model.logit_scale) * sim


if __name__ == "__main__":
    B = 2
    C = 4
    IMG_SIZE = 16
    CONTEXT_LENGTH = 8
    EMBED_DIM = 32
    VOCAB = 64
    TOKEN_DIM = 16

    model = Perceptor(IMG_SIZE, CONTEXT_LENGTH,
                      in_channels=C, embed_dim=EMBED_DIM,
                      vocab_size=VOCAB, token_dim=TOKEN_DIM)

    key = jax.random.PRNGKey(0)
    k_img, k_txt = jax.random.split(key)
    image = jax.random.normal(k_img, (B, C, IMG_SIZE, IMG_SIZE),
                              dtype=jnp.float32)
    text = jax.random.randint(k_txt, (B, CONTEXT_LENGTH), 0, VOCAB,
                              dtype=jnp.int32)

    logits = model(image, text)
    logits = jax.block_until_ready(logits)

    ref = reference_forward(model, image, text)
    assert logits.shape == (B, B), logits.shape
    assert jnp.allclose(logits, ref, rtol=2e-2, atol=2e-2), (
        "mismatch vs reference")

    print("KERNEL_OK")
</pallas_src>

<mosaic_0001>
module attributes {stable_mosaic.version = 11 : i64} {
  func.func @_matmul_kernel(%arg0: i32, %arg1: i32, %arg2: i32, %arg3: memref<8x1024xbf16, #tpu.memory_space<vmem>>, %arg4: memref<1024x128xbf16, #tpu.memory_space<vmem>>, %arg5: memref<8x128xbf16, #tpu.memory_space<vmem>>, %arg6: memref<8x128xf32, #tpu.memory_space<vmem>>) attributes {dimension_semantics = [#tpu.dimension_semantics<parallel>, #tpu.dimension_semantics<parallel>, #tpu.dimension_semantics<arbitrary>], iteration_bounds = array<i64: 1, 1, 1>, scalar_prefetch = 0 : i64, scratch_operands = 1 : i64, tpu.core_type = #tpu.core_type<tc>, window_params = [{transform_indices = @transform_0, window_bounds = array<i64: 8, 1024>}, {transform_indices = @transform_1, window_bounds = array<i64: 1024, 128>}, {transform_indices = @transform_2, window_bounds = array<i64: 8, 128>}]} {
    %c0_i32 = arith.constant 0 : i32
    %0 = arith.cmpi eq, %arg2, %c0_i32 : i32
    %1 = arith.extui %0 : i1 to i32
    %c0_i32_0 = arith.constant 0 : i32
    %2 = arith.cmpi ne, %1, %c0_i32_0 : i32
    scf.if %2 {
      %cst_10 = arith.constant 0.000000e+00 : f32
      %12 = vector.broadcast %cst_10 : f32 to vector<8x128xf32>
      %c0_11 = arith.constant 0 : index
      %c0_12 = arith.constant 0 : index
      %13 = vector.load %arg6[%c0_11, %c0_12] : memref<8x128xf32, #tpu.memory_space<vmem>>, vector<8x128xf32>
      tpu.vector_store %arg6[%c0_11, %c0_12], %12 {strides = array<i32>} : memref<8x128xf32, #tpu.memory_space<vmem>>, vector<8x128xf32>,
    } else {
    }
    %c0 = arith.constant 0 : index
    %c0_1 = arith.constant 0 : index
    %3 = vector.load %arg6[%c0, %c0_1] : memref<8x128xf32, #tpu.memory_space<vmem>>, vector<8x128xf32>
    %c0_2 = arith.constant 0 : index
    %c0_3 = arith.constant 0 : index
    %4 = vector.load %arg3[%c0_2, %c0_3] : memref<8x1024xbf16, #tpu.memory_space<vmem>>, vector<8x1024xbf16>
    %c0_4 = arith.constant 0 : index
    %c0_5 = arith.constant 0 : index
    %5 = vector.load %arg4[%c0_4, %c0_5] : memref<1024x128xbf16, #tpu.memory_space<vmem>>, vector<1024x128xbf16>
    %cst = arith.constant dense<0.000000e+00> : vector<8x128xf32>
    %6 = tpu.matmul %4, %5, %cst {dimension_numbers = #tpu.dot_dimension_numbers<[1], [0], [0], [1], [0, 0, 1, 1], [], []>} : vector<8x1024xbf16>, vector<1024x128xbf16>, vector<8x128xf32> -> vector<8x128xf32>
    %7 = arith.addf %3, %6 : vector<8x128xf32>
    %c0_6 = arith.constant 0 : index
    %c0_7 = arith.constant 0 : index
    %8 = vector.load %arg6[%c0_6, %c0_7] : memref<8x128xf32, #tpu.memory_space<vmem>>, vector<8x128xf32>
    tpu.vector_store %arg6[%c0_6, %c0_7], %7 {strides = array<i32>} : memref<8x128xf32, #tpu.memory_space<vmem>>, vector<8x128xf32>,
    %c0_i32_8 = arith.constant 0 : i32
    %9 = arith.cmpi eq, %arg2, %c0_i32_8 : i32
    %10 = arith.extui %9 : i1 to i32
    %c0_i32_9 = arith.constant 0 : i32
    %11 = arith.cmpi ne, %10, %c0_i32_9 : i32
    scf.if %11 {
      %c0_10 = arith.constant 0 : index
      %c0_11 = arith.constant 0 : index
      %12 = vector.load %arg6[%c0_10, %c0_11] : memref<8x128xf32, #tpu.memory_space<vmem>>, vector<8x128xf32>
      %13 = arith.truncf %12 : vector<8x128xf32> to vector<8x128xbf16>
      %c0_12 = arith.constant 0 : index
      %c0_13 = arith.constant 0 : index
      %14 = vector.load %arg5[%c0_12, %c0_13] : memref<8x128xbf16, #tpu.memory_space<vmem>>, vector<8x128xbf16>
      tpu.vector_store %arg5[%c0_12, %c0_13], %13 {strides = array<i32>} : memref<8x128xbf16, #tpu.memory_space<vmem>>, vector<8x128xbf16>,
    } else {
    }
    return
  }
  func.func @transform_0(%arg0: i32, %arg1: i32, %arg2: i32) -> (i32, i32) {
    %c0_i32 = arith.constant 0 : i32
    return %arg0, %arg2 : i32, i32
  }
  func.func @transform_1(%arg0: i32, %arg1: i32, %arg2: i32) -> (i32, i32) {
    %c0_i32 = arith.constant 0 : i32
    return %arg2, %arg1 : i32, i32
  }
  func.func @transform_2(%arg0: i32, %arg1: i32, %arg2: i32) -> (i32, i32) {
    %c0_i32 = arith.constant 0 : i32
    return %arg0, %arg1 : i32, i32
  }
}

</mosaic_0001>

<llo_original>
// kernel: tpu_custom_call.1
$region0: #{tpu_custom_call.1}
  #allocation0 [shape = 'u32[]', space=smem, size = 0x4, offset = 0x4, fixed_abs, tag = 'smem constant byte address 0x4 - core index']
  #allocation1 [shape = 'u32[144,128]{1,0:T(1,128)}', space=vmem, size = 0x12000, scoped, tag = 'internal scratch']
  #allocation2 [shape = 'f32[8,128]{1,0:T(8,128)}', space=vmem, size = 0x1000, scoped, tag = 'scratch operand']
  %s0 = inlined_call_operand.hbm [shape: bf16[8,1024], index: 0, kind: input, shape index: {}]
  %s1 = inlined_call_operand.hbm [shape: bf16[1024,128], index: 1, kind: input, shape index: {}]
  %s2 = inlined_call_operand.hbm [shape: bf16[8,128], index: 2, kind: output, shape index: {}]
  %s3 = sld [smem:[#allocation0]]
  $region34: #{tpu_custom_call.1} parent=0
    _
  %s5 = ssub.s32 1, %s3
  %s6 = scalar_select 0, %s5, %s3
  $region1: #{tpu_custom_call.1} parent=0
    #allocation3 [shape = 'u8[16384]{0}', space=vmem, size = 0x4000, scoped, tag = 'input window, operand 0, single buffered']
    #allocation4 [shape = 's32[1]{0}', space=sflag, size = 0x4, scoped, tag = 'scoped memory for tpu_custom_call.1']
    #allocation5 [shape = 's32[1]{0}', space=sflag, size = 0x4, scoped, tag = 'scoped memory for tpu_custom_call.1']
    #allocation6 [shape = 'u8[262144]{0}', space=vmem, size = 0x40000, scoped, tag = 'input window, operand 1, single buffered']
    #allocation7 [shape = 's32[1]{0}', space=sflag, size = 0x4, scoped, tag = 'scoped memory for tpu_custom_call.1']
    #allocation8 [shape = 'u8[2048]{0}', space=vmem, size = 0x800, scoped, tag = 'output window, operand 0, single buffered']
    %7 = vsyncpa [#allocation4], 0
    %8 = vsyncpa [#allocation7], 0
    %9 = vsyncpa [#allocation5], 0
    // Predicated region
    $region2: #{tpu_custom_call.1} parent=1 // pred_check
      _
    $region3: #{tpu_custom_call.1} parent=1 // pred_check_branch
      %11 = sbr.rel (0) target = $region5
    $region4: #{tpu_custom_call.1} parent=1 // pred_region
      %s13 = ssub.s32 512, 512
      %14 = vsyncadd [#allocation4], %s13
      %s16 = sshll.u32 [#allocation3], 4
      %s17 = int_to_ptr.vmem [resolvable:$true] %s16
      %19 = dma.hbm_to_vmem [thread:$0]  %s0, 512, %s17, [#allocation4]
    $region5: #{tpu_custom_call.1} parent=1 // pred_fallthru
      _
    // Predicated region
    $region6: #{tpu_custom_call.1} parent=1 // pred_check
      _
    $region7: #{tpu_custom_call.1} parent=1 // pred_check_branch
      %21 = sbr.rel (0) target = $region9
    $region8: #{tpu_custom_call.1} parent=1 // pred_region
      %s23 = ssub.s32 8192, 8192
      %24 = vsyncadd [#allocation7], %s23
      %s25 = sshll.u32 [#allocation6], 4
      %s26 = int_to_ptr.vmem [resolvable:$true] %s25
      %31 = dma.hbm_to_vmem [thread:$0]  %s1, 8192, %s26, [#allocation7], 64, 64, 4
    $region9: #{tpu_custom_call.1} parent=1 // pred_fallthru
      _
    // Predicated region
    $region10: #{tpu_custom_call.1} parent=1 // pred_check
      _
    $region11: #{tpu_custom_call.1} parent=1 // pred_check_branch
      %33 = sbr.rel (0) target = $region13
    $region12: #{tpu_custom_call.1} parent=1 // pred_region
      %34 = dma.done [#allocation4], 512
    $region13: #{tpu_custom_call.1} parent=1 // pred_fallthru
      _
    // Predicated region
    $region14: #{tpu_custom_call.1} parent=1 // pred_check
      _
    $region15: #{tpu_custom_call.1} parent=1 // pred_check_branch
      %36 = sbr.rel (0) target = $region17
    $region16: #{tpu_custom_call.1} parent=1 // pred_region
      %37 = dma.done [#allocation7], 8192
    $region17: #{tpu_custom_call.1} parent=1 // pred_fallthru
      _
    %p39 = scmp.eq.s32.totalorder 0, 0
    // Predicated region
    $region18: #{tpu_custom_call.1} parent=1 // pred_check
      %p40 = pneg %p39
    $region19: #{tpu_custom_call.1} parent=1 // pred_check_branch
      %42 = sbr.rel (%p40) target = $region21
    $region20: #{tpu_custom_call.1} parent=1 // pred_region
      %43 = vst [vmem:[#allocation2] sm:$0xff] 0.0
    $region21: #{tpu_custom_call.1} parent=1 // pred_fallthru
      _
    %v44 = vld [vmem:[#allocation2] sm:$0xff]
    %v45 = vld [vmem:[#allocation3] sm:$0xff]
    %v46 = vld [vmem:[#allocation3 + $0x8] sm:$0xff]
    %v47 = vld [vmem:[#allocation3 + $0x10] sm:$0xff]
    %v48 = vld [vmem:[#allocation3 + $0x18] sm:$0xff]
    %v49 = vld [vmem:[#allocation6] sm:$0xf]
    %v50 = vld [vmem:[#allocation6 + $0x4] sm:$0xf]
    %v51 = vld [vmem:[#allocation6 + $0x8] sm:$0xf]
    %v52 = vld [vmem:[#allocation6 + $0xc] sm:$0xf]
    %v53 = vld [vmem:[#allocation6 + $0x10] sm:$0xf]
    %v54 = vld [vmem:[#allocation6 + $0x14] sm:$0xf]
    %v55 = vld [vmem:[#allocation6 + $0x18] sm:$0xf]
    %v56 = vld [vmem:[#allocation6 + $0x1c] sm:$0xf]
    %v57 = vld [vmem:[#allocation6 + $0x20] sm:$0xf]
    %v58 = vld [vmem:[#allocation6 + $0x24] sm:$0xf]
    %v59 = vld [vmem:[#allocation6 + $0x28] sm:$0xf]
    %v60 = vld [vmem:[#allocation6 + $0x2c] sm:$0xf]
    %v61 = vld [vmem:[#allocation6 + $0x30] sm:$0xf]
    %v62 = vld [vmem:[#allocation6 + $0x34] sm:$0xf]
    %v63 = vld [vmem:[#allocation6 + $0x38] sm:$0xf]
    %v64 = vld [vmem:[#allocation6 + $0x3c] sm:$0xf]
    %v65 = vld [vmem:[#allocation6 + $0x40] sm:$0xf]
    %v66 = vld [vmem:[#allocation6 + $0x44] sm:$0xf]
    %v67 = vld [vmem:[#allocation6 + $0x48] sm:$0xf]
    %v68 = vld [vmem:[#allocation6 + $0x4c] sm:$0xf]
    %v69 = vld [vmem:[#allocation6 + $0x50] sm:$0xf]
    %v70 = vld [vmem:[#allocation6 + $0x54] sm:$0xf]
    %v71 = vld [vmem:[#allocation6 + $0x58] sm:$0xf]
    %v72 = vld [vmem:[#allocation6 + $0x5c] sm:$0xf]
    %v73 = vld [vmem:[#allocation6 + $0x60] sm:$0xf]
    %v74 = vld [vmem:[#allocation6 + $0x64] sm:$0xf]
    %v75 = vld [vmem:[#allocation6 + $0x68] sm:$0xf]
    %v76 = vld [vmem:[#allocation6 + $0x6c] sm:$0xf]
    %v77 = vld [vmem:[#allocation6 + $0x70] sm:$0xf]
    %v78 = vld [vmem:[#allocation6 + $0x74] sm:$0xf]
    %v79 = vld [vmem:[#allocation6 + $0x78] sm:$0xf]
    %v80 = vld [vmem:[#allocation6 + $0x7c] sm:$0xf]
    %v81 = vld [vmem:[#allocation6 + $0x80] sm:$0xf]
    %v82 = vld [vmem:[#allocation6 + $0x84] sm:$0xf]
    %v83 = vld [vmem:[#allocation6 + $0x88] sm:$0xf]
    %v84 = vld [vmem:[#allocation6 + $0x8c] sm:$0xf]
    %v85 = vld [vmem:[#allocation6 + $0x90] sm:$0xf]
    %v86 = vld [vmem:[#allocation6 + $0x94] sm:$0xf]
    %v87 = vld [vmem:[#allocation6 + $0x98] sm:$0xf]
    %v88 = vld [vmem:[#allocation6 + $0x9c] sm:$0xf]
    %v89 = vld [vmem:[#allocation6 + $0xa0] sm:$0xf]
    %v90 = vld [vmem:[#allocation6 + $0xa4] sm:$0xf]
    %v91 = vld [vmem:[#allocation6 + $0xa8] sm:$0xf]
    %v92 = vld [vmem:[#allocation6 + $0xac] sm:$0xf]
    %v93 = vld [vmem:[#allocation6 + $0xb0] sm:$0xf]
    %v94 = vld [vmem:[#allocation6 + $0xb4] sm:$0xf]
    %v95 = vld [vmem:[#allocation6 + $0xb8] sm:$0xf]
    %v96 = vld [vmem:[#allocation6 + $0xbc] sm:$0xf]
    %v97 = vld [vmem:[#allocation6 + $0xc0] sm:$0xf]
    %v98 = vld [vmem:[#allocation6 + $0xc4] sm:$0xf]
    %v99 = vld [vmem:[#allocation6 + $0xc8] sm:$0xf]
    %v100 = vld [vmem:[#allocation6 + $0xcc] sm:$0xf]
    %v101 = vld [vmem:[#allocation6 + $0xd0] sm:$0xf]
    %v102 = vld [vmem:[#allocation6 + $0xd4] sm:$0xf]
    %v103 = vld [vmem:[#allocation6 + $0xd8] sm:$0xf]
    %v104 = vld [vmem:[#allocation6 + $0xdc] sm:$0xf]
    %v105 = vld [vmem:[#allocation6 + $0xe0] sm:$0xf]
    %v106 = vld [vmem:[#allocation6 + $0xe4] sm:$0xf]
    %v107 = vld [vmem:[#allocation6 + $0xe8] sm:$0xf]
    %v108 = vld [vmem:[#allocation6 + $0xec] sm:$0xf]
    %v109 = vld [vmem:[#allocation6 + $0xf0] sm:$0xf]
    %v110 = vld [vmem:[#allocation6 + $0xf4] sm:$0xf]
    %v111 = vld [vmem:[#allocation6 + $0xf8] sm:$0xf]
    %v112 = vld [vmem:[#allocation6 + $0xfc] sm:$0xf]
    %v113 = vld [vmem:[#allocation6 + $0x100] sm:$0xf]
    %v114 = vld [vmem:[#allocation6 + $0x104] sm:$0xf]
    %v115 = vld [vmem:[#allocation6 + $0x108] sm:$0xf]
    %v116 = vld [vmem:[#allocation6 + $0x10c] sm:$0xf]
    %v117 = vld [vmem:[#allocation6 + $0x110] sm:$0xf]
    %v118 = vld [vmem:[#allocation6 + $0x114] sm:$0xf]
    %v119 = vld [vmem:[#allocation6 + $0x118] sm:$0xf]
    %v120 = vld [vmem:[#allocation6 + $0x11c] sm:$0xf]
    %v121 = vld [vmem:[#allocation6 + $0x120] sm:$0xf]
    %v122 = vld [vmem:[#allocation6 + $0x124] sm:$0xf]
    %v123 = vld [vmem:[#allocation6 + $0x128] sm:$0xf]
    %v124 = vld [vmem:[#allocation6 + $0x12c] sm:$0xf]
    %v125 = vld [vmem:[#allocation6 + $0x130] sm:$0xf]
    %v126 = vld [vmem:[#allocation6 + $0x134] sm:$0xf]
    %v127 = vld [vmem:[#allocation6 + $0x138] sm:$0xf]
    %v128 = vld [vmem:[#allocation6 + $0x13c] sm:$0xf]
    %v129 = vld [vmem:[#allocation6 + $0x140] sm:$0xf]
    %v130 = vld [vmem:[#allocation6 + $0x144] sm:$0xf]
    %v131 = vld [vmem:[#allocation6 + $0x148] sm:$0xf]
    %v132 = vld [vmem:[#allocation6 + $0x14c] sm:$0xf]
    %v133 = vld [vmem:[#allocation6 + $0x150] sm:$0xf]
    %v134 = vld [vmem:[#allocation6 + $0x154] sm:$0xf]
    %v135 = vld [vmem:[#allocation6 + $0x158] sm:$0xf]
    %v136 = vld [vmem:[#allocation6 + $0x15c] sm:$0xf]
    %v137 = vld [vmem:[#allocation6 + $0x160] sm:$0xf]
    %v138 = vld [vmem:[#allocation6 + $0x164] sm:$0xf]
    %v139 = vld [vmem:[#allocation6 + $0x168] sm:$0xf]
    %v140 = vld [vmem:[#allocation6 + $0x16c] sm:$0xf]
    %v141 = vld [vmem:[#allocation6 + $0x170] sm:$0xf]
    %v142 = vld [vmem:[#allocation6 + $0x174] sm:$0xf]
    %v143 = vld [vmem:[#allocation6 + $0x178] sm:$0xf]
    %v144 = vld [vmem:[#allocation6 + $0x17c] sm:$0xf]
    %v145 = vld [vmem:[#allocation6 + $0x180] sm:$0xf]
    %v146 = vld [vmem:[#allocation6 + $0x184] sm:$0xf]
    %v147 = vld [vmem:[#allocation6 + $0x188] sm:$0xf]
    %v148 = vld [vmem:[#allocation6 + $0x18c] sm:$0xf]
    %v149 = vld [vmem:[#allocation6 + $0x190] sm:$0xf]
    %v150 = vld [vmem:[#allocation6 + $0x194] sm:$0xf]
    %v151 = vld [vmem:[#allocation6 + $0x198] sm:$0xf]
    %v152 = vld [vmem:[#allocation6 + $0x19c] sm:$0xf]
    %v153 = vld [vmem:[#allocation6 + $0x1a0] sm:$0xf]
    %v154 = vld [vmem:[#allocation6 + $0x1a4] sm:$0xf]
    %v155 = vld [vmem:[#allocation6 + $0x1a8] sm:$0xf]
    %v156 = vld [vmem:[#allocation6 + $0x1ac] sm:$0xf]
    %v157 = vld [vmem:[#allocation6 + $0x1b0] sm:$0xf]
    %v158 = vld [vmem:[#allocation6 + $0x1b4] sm:$0xf]
    %v159 = vld [vmem:[#allocation6 + $0x1b8] sm:$0xf]
    %v160 = vld [vmem:[#allocation6 + $0x1bc] sm:$0xf]
    %v161 = vld [vmem:[#allocation6 + $0x1c0] sm:$0xf]
    %v162 = vld [vmem:[#allocation6 + $0x1c4] sm:$0xf]
    %v163 = vld [vmem:[#allocation6 + $0x1c8] sm:$0xf]
    %v164 = vld [vmem:[#allocation6 + $0x1cc] sm:$0xf]
    %v165 = vld [vmem:[#allocation6 + $0x1d0] sm:$0xf]
    %v166 = vld [vmem:[#allocation6 + $0x1d4] sm:$0xf]
    %v167 = vld [vmem:[#allocation6 + $0x1d8] sm:$0xf]
    %v168 = vld [vmem:[#allocation6 + $0x1dc] sm:$0xf]
    %v169 = vld [vmem:[#allocation6 + $0x1e0] sm:$0xf]
    %v170 = vld [vmem:[#allocation6 + $0x1e4] sm:$0xf]
    %v171 = vld [vmem:[#allocation6 + $0x1e8] sm:$0xf]
    %v172 = vld [vmem:[#allocation6 + $0x1ec] sm:$0xf]
    %v173 = vld [vmem:[#allocation6 + $0x1f0] sm:$0xf]
    %v174 = vld [vmem:[#allocation6 + $0x1f4] sm:$0xf]
    %v175 = vld [vmem:[#allocation6 + $0x1f8] sm:$0xf]
    %v176 = vld [vmem:[#allocation6 + $0x1fc] sm:$0xf]
    %v181 = vunpack.c.l.b16 %v45
    %v182 = vunpack.c.h.b16 %v45
    %v183 = vunpack.c.l.b16 %v46
    %v184 = vunpack.c.h.b16 %v46
    %v185 = vunpack.c.l.b16 %v47
    %v186 = vunpack.c.h.b16 %v47
    %v187 = vunpack.c.l.b16 %v48
    %v188 = vunpack.c.h.b16 %v48
    %v189 = vpack.c.b16 %v181, %v181
    %v190 = vpack.c.b16 %v182, %v182
    %v191 = vpack.c.b16 %v183, %v183
    %v192 = vpack.c.b16 %v184, %v184
    %v193 = vpack.c.b16 %v185, %v185
    %v194 = vpack.c.b16 %v186, %v186
    %v195 = vpack.c.b16 %v187, %v187
    %v196 = vpack.c.b16 %v188, %v188
    %v333 = vunpack.c.l.b16 %v49
    %v334 = vunpack.c.l.b16 %v50
    %v335 = vunpack.c.l.b16 %v51
    %v336 = vunpack.c.l.b16 %v52
    %v337 = vunpack.c.l.b16 %v53
    %v338 = vunpack.c.l.b16 %v54
    %v339 = vunpack.c.l.b16 %v55
    %v340 = vunpack.c.l.b16 %v56
    %v341 = vunpack.c.l.b16 %v57
    %v342 = vunpack.c.l.b16 %v58
    %v343 = vunpack.c.l.b16 %v59
    %v344 = vunpack.c.l.b16 %v60
    %v345 = vunpack.c.l.b16 %v61
    %v346 = vunpack.c.l.b16 %v62
    %v347 = vunpack.c.l.b16 %v63
    %v348 = vunpack.c.l.b16 %v64
    %v349 = vunpack.c.l.b16 %v65
    %v350 = vunpack.c.l.b16 %v66
    %v351 = vunpack.c.l.b16 %v67
    %v352 = vunpack.c.l.b16 %v68
    %v353 = vunpack.c.l.b16 %v69
    %v354 = vunpack.c.l.b16 %v70
    %v355 = vunpack.c.l.b16 %v71
    %v356 = vunpack.c.l.b16 %v72
    %v357 = vunpack.c.l.b16 %v73
    %v358 = vunpack.c.l.b16 %v74
    %v359 = vunpack.c.l.b16 %v75
    %v360 = vunpack.c.l.b16 %v76
    %v361 = vunpack.c.l.b16 %v77
    %v362 = vunpack.c.l.b16 %v78
    %v363 = vunpack.c.l.b16 %v79
    %v364 = vunpack.c.l.b16 %v80
    %v365 = vunpack.c.l.b16 %v81
    %v366 = vunpack.c.l.b16 %v82
    %v367 = vunpack.c.l.b16 %v83
    %v368 = vunpack.c.l.b16 %v84
    %v369 = vunpack.c.l.b16 %v85
    %v370 = vunpack.c.l.b16 %v86
    %v371 = vunpack.c.l.b16 %v87
    %v372 = vunpack.c.l.b16 %v88
    %v373 = vunpack.c.l.b16 %v89
    %v374 = vunpack.c.l.b16 %v90
    %v375 = vunpack.c.l.b16 %v91
    %v376 = vunpack.c.l.b16 %v92
    %v377 = vunpack.c.l.b16 %v93
    %v378 = vunpack.c.l.b16 %v94
    %v379 = vunpack.c.l.b16 %v95
    %v380 = vunpack.c.l.b16 %v96
    %v381 = vunpack.c.l.b16 %v97
    %v382 = vunpack.c.l.b16 %v98
    %v383 = vunpack.c.l.b16 %v99
    %v384 = vunpack.c.l.b16 %v100
    %v385 = vunpack.c.l.b16 %v101
    %v386 = vunpack.c.l.b16 %v102
    %v387 = vunpack.c.l.b16 %v103
    %v388 = vunpack.c.l.b16 %v104
    %v389 = vunpack.c.l.b16 %v105
    %v390 = vunpack.c.l.b16 %v106
    %v391 = vunpack.c.l.b16 %v107
    %v392 = vunpack.c.l.b16 %v108
    %v393 = vunpack.c.l.b16 %v109
    %v394 = vunpack.c.l.b16 %v110
    %v395 = vunpack.c.l.b16 %v111
    %v396 = vunpack.c.l.b16 %v112
    %v397 = vunpack.c.l.b16 %v113
    %v398 = vunpack.c.l.b16 %v114
    %v399 = vunpack.c.l.b16 %v115
    %v400 = vunpack.c.l.b16 %v116
    %v401 = vunpack.c.l.b16 %v117
    %v402 = vunpack.c.l.b16 %v118
    %v403 = vunpack.c.l.b16 %v119
    %v404 = vunpack.c.l.b16 %v120
    %v405 = vunpack.c.l.b16 %v121
    %v406 = vunpack.c.l.b16 %v122
    %v407 = vunpack.c.l.b16 %v123
    %v408 = vunpack.c.l.b16 %v124
    %v409 = vunpack.c.l.b16 %v125
    %v410 = vunpack.c.l.b16 %v126
    %v411 = vunpack.c.l.b16 %v127
    %v412 = vunpack.c.l.b16 %v128
    %v413 = vunpack.c.l.b16 %v129
    %v414 = vunpack.c.l.b16 %v130
    %v415 = vunpack.c.l.b16 %v131
    %v416 = vunpack.c.l.b16 %v132
    %v417 = vunpack.c.l.b16 %v133
    %v418 = vunpack.c.l.b16 %v134
    %v419 = vunpack.c.l.b16 %v135
    %v420 = vunpack.c.l.b16 %v136
    %v421 = vunpack.c.l.b16 %v137
    %v422 = vunpack.c.l.b16 %v138
    %v423 = vunpack.c.l.b16 %v139
    %v424 = vunpack.c.l.b16 %v140
    %v425 = vunpack.c.l.b16 %v141
    %v426 = vunpack.c.l.b16 %v142
    %v427 = vunpack.c.l.b16 %v143
    %v428 = vunpack.c.l.b16 %v144
    %v429 = vunpack.c.l.b16 %v145
    %v430 = vunpack.c.l.b16 %v146
    %v431 = vunpack.c.l.b16 %v147
    %v432 = vunpack.c.l.b16 %v148
    %v433 = vunpack.c.l.b16 %v149
    %v434 = vunpack.c.l.b16 %v150
    %v435 = vunpack.c.l.b16 %v151
    %v436 = vunpack.c.l.b16 %v152
    %v437 = vunpack.c.l.b16 %v153
    %v438 = vunpack.c.l.b16 %v154
    %v439 = vunpack.c.l.b16 %v155
    %v440 = vunpack.c.l.b16 %v156
    %v441 = vunpack.c.l.b16 %v157
    %v442 = vunpack.c.l.b16 %v158
    %v443 = vunpack.c.l.b16 %v159
    %v444 = vunpack.c.l.b16 %v160
    %v445 = vunpack.c.l.b16 %v161
    %v446 = vunpack.c.l.b16 %v162
    %v447 = vunpack.c.l.b16 %v163
    %v448 = vunpack.c.l.b16 %v164
    %v449 = vunpack.c.l.b16 %v165
    %v450 = vunpack.c.l.b16 %v166
    %v451 = vunpack.c.l.b16 %v167
    %v452 = vunpack.c.l.b16 %v168
    %v453 = vunpack.c.l.b16 %v169
    %v454 = vunpack.c.l.b16 %v170
    %v455 = vunpack.c.l.b16 %v171
    %v456 = vunpack.c.l.b16 %v172
    %v457 = vunpack.c.l.b16 %v173
    %v458 = vunpack.c.l.b16 %v174
    %v459 = vunpack.c.l.b16 %v175
    %v460 = vunpack.c.l.b16 %v176
    %v461 = vpack.c.b16 %v334, %v333
    %v462 = vpack.c.b16 %v336, %v335
    %v463 = vpack.c.b16 %v338, %v337
    %v464 = vpack.c.b16 %v340, %v339
    %v465 = vpack.c.b16 %v342, %v341
    %v466 = vpack.c.b16 %v344, %v343
    %v467 = vpack.c.b16 %v346, %v345
    %v468 = vpack.c.b16 %v348, %v347
    %v469 = vpack.c.b16 %v350, %v349
    %v470 = vpack.c.b16 %v352, %v351
    %v471 = vpack.c.b16 %v354, %v353
    %v472 = vpack.c.b16 %v356, %v355
    %v473 = vpack.c.b16 %v358, %v357
    %v474 = vpack.c.b16 %v360, %v359
    %v475 = vpack.c.b16 %v362, %v361
    %v476 = vpack.c.b16 %v364, %v363
    %v477 = vpack.c.b16 %v366, %v365
    %v478 = vpack.c.b16 %v368, %v367
    %v479 = vpack.c.b16 %v370, %v369
    %v480 = vpack.c.b16 %v372, %v371
    %v481 = vpack.c.b16 %v374, %v373
    %v482 = vpack.c.b16 %v376, %v375
    %v483 = vpack.c.b16 %v378, %v377
    %v484 = vpack.c.b16 %v380, %v379
    %v485 = vpack.c.b16 %v382, %v381
    %v486 = vpack.c.b16 %v384, %v383
    %v487 = vpack.c.b16 %v386, %v385
    %v488 = vpack.c.b16 %v388, %v387
    %v489 = vpack.c.b16 %v390, %v389
    %v490 = vpack.c.b16 %v392, %v391
    %v491 = vpack.c.b16 %v394, %v393
    %v492 = vpack.c.b16 %v396, %v395
    %v493 = vpack.c.b16 %v398, %v397
    %v494 = vpack.c.b16 %v400, %v399
    %v495 = vpack.c.b16 %v402, %v401
    %v496 = vpack.c.b16 %v404, %v403
    %v497 = vpack.c.b16 %v406, %v405
    %v498 = vpack.c.b16 %v408, %v407
    %v499 = vpack.c.b16 %v410, %v409
    %v500 = vpack.c.b16 %v412, %v411
    %v501 = vpack.c.b16 %v414, %v413
    %v502 = vpack.c.b16 %v416, %v415
    %v503 = vpack.c.b16 %v418, %v417
    %v504 = vpack.c.b16 %v420, %v419
    %v505 = vpack.c.b16 %v422, %v421
    %v506 = vpack.c.b16 %v424, %v423
    %v507 = vpack.c.b16 %v426, %v425
    %v508 = vpack.c.b16 %v428, %v427
    %v509 = vpack.c.b16 %v430, %v429
    %v510 = vpack.c.b16 %v432, %v431
    %v511 = vpack.c.b16 %v434, %v433
    %v512 = vpack.c.b16 %v436, %v435
    %v513 = vpack.c.b16 %v438, %v437
    %v514 = vpack.c.b16 %v440, %v439
    %v515 = vpack.c.b16 %v442, %v441
    %v516 = vpack.c.b16 %v444, %v443
    %v517 = vpack.c.b16 %v446, %v445
    %v518 = vpack.c.b16 %v448, %v447
    %v519 = vpack.c.b16 %v450, %v449
    %v520 = vpack.c.b16 %v452, %v451
    %v521 = vpack.c.b16 %v454, %v453
    %v522 = vpack.c.b16 %v456, %v455
    %v523 = vpack.c.b16 %v458, %v457
    %v524 = vpack.c.b16 %v460, %v459
    %589 = vmatprep.subr.bf16.mxu0 0
    %590 = vmatpush1.bf16.msra.mxu0 %v461
    %591 = vmatprep.subr.bf16.mxu0 0
    %592 = vmatpush1.bf16.msra.mxu0 %v462
    %593 = vmatprep.subr.bf16.mxu0 0
    %594 = vmatpush1.bf16.msra.mxu0 %v463
    %595 = vmatprep.subr.bf16.mxu0 0
    %596 = vmatpush1.bf16.msra.mxu0 %v464
    %597 = vmatprep.subr.bf16.mxu0 0
    %598 = vmatpush1.bf16.msra.mxu0 %v465
    %599 = vmatprep.subr.bf16.mxu0 0
    %600 = vmatpush1.bf16.msra.mxu0 %v466
    %601 = vmatprep.subr.bf16.mxu0 0
    %602 = vmatpush1.bf16.msra.mxu0 %v467
    %603 = vmatprep.subr.bf16.mxu0 0
    %604 = vmatpush1.bf16.msra.mxu0 %v468
    %605 = vmatprep.subr.bf16.mxu0 0
    %606 = vmatpush1.bf16.msra.mxu0 %v469
    %607 = vmatprep.subr.bf16.mxu0 0
    %608 = vmatpush1.bf16.msra.mxu0 %v470
    %609 = vmatprep.subr.bf16.mxu0 0
    %610 = vmatpush1.bf16.msra.mxu0 %v471
    %611 = vmatprep.subr.bf16.mxu0 0
    %612 = vmatpush1.bf16.msra.mxu0 %v472
    %613 = vmatprep.subr.bf16.mxu0 0
    %614 = vmatpush1.bf16.msra.mxu0 %v473
    %615 = vmatprep.subr.bf16.mxu0 0
    %616 = vmatpush1.bf16.msra.mxu0 %v474
    %617 = vmatprep.subr.bf16.mxu0 0
    %618 = vmatpush1.bf16.msra.mxu0 %v475
    %619 = vmatprep.subr.bf16.mxu0 0
    %620 = vmatpush1.bf16.msra.mxu0 %v476
    %621 = vmatprep.mubr.bf16.mxu0 %v190
    %622 = vmatmul.mubr.bf16.gmra.mrb[0].mxu0 %v189
    %v623 = vpop.f32.mrb[0].mxu0
    %v624 = vadd.f32 0.0, %v623
    %v625 = vpop.f32.mrb[0].mxu0
    %v626 = vpop.f32.mrb[0].mxu0
    %v627 = vpop.f32.mrb[0].mxu0
    %628 = vdwg.mxu0
    %629 = vmatprep.subr.bf16.mxu0 0
    %630 = vmatpush1.bf16.msra.mxu0 %v477
    %631 = vmatprep.subr.bf16.mxu0 0
    %632 = vmatpush1.bf16.msra.mxu0 %v478
    %633 = vmatprep.subr.bf16.mxu0 0
    %634 = vmatpush1.bf16.msra.mxu0 %v479
    %635 = vmatprep.subr.bf16.mxu0 0
    %636 = vmatpush1.bf16.msra.mxu0 %v480
    %637 = vmatprep.subr.bf16.mxu0 0
    %638 = vmatpush1.bf16.msra.mxu0 %v481
    %639 = vmatprep.subr.bf16.mxu0 0
    %640 = vmatpush1.bf16.msra.mxu0 %v482
    %641 = vmatprep.subr.bf16.mxu0 0
    %642 = vmatpush1.bf16.msra.mxu0 %v483
    %643 = vmatprep.subr.bf16.mxu0 0
    %644 = vmatpush1.bf16.msra.mxu0 %v484
    %645 = vmatprep.subr.bf16.mxu0 0
    %646 = vmatpush1.bf16.msra.mxu0 %v485
    %647 = vmatprep.subr.bf16.mxu0 0
    %648 = vmatpush1.bf16.msra.mxu0 %v486
    %649 = vmatprep.subr.bf16.mxu0 0
    %650 = vmatpush1.bf16.msra.mxu0 %v487
    %651 = vmatprep.subr.bf16.mxu0 0
    %652 = vmatpush1.bf16.msra.mxu0 %v488
    %653 = vmatprep.subr.bf16.mxu0 0
    %654 = vmatpush1.bf16.msra.mxu0 %v489
    %655 = vmatprep.subr.bf16.mxu0 0
    %656 = vmatpush1.bf16.msra.mxu0 %v490
    %657 = vmatprep.subr.bf16.mxu0 0
    %658 = vmatpush1.bf16.msra.mxu0 %v491
    %659 = vmatprep.subr.bf16.mxu0 0
    %660 = vmatpush1.bf16.msra.mxu0 %v492
    %661 = vmatprep.mubr.bf16.mxu0 %v192
    %662 = vmatmul.mubr.bf16.gmra.mrb[0].mxu0 %v191
    %v663 = vpop.f32.mrb[0].mxu0
    %v664 = vadd.f32 %v624, %v663
    %v665 = vpop.f32.mrb[0].mxu0
    %v666 = vpop.f32.mrb[0].mxu0
    %v667 = vpop.f32.mrb[0].mxu0
    %668 = vdwg.mxu0
    %669 = vmatprep.subr.bf16.mxu0 0
    %670 = vmatpush1.bf16.msra.mxu0 %v493
    %671 = vmatprep.subr.bf16.mxu0 0
    %672 = vmatpush1.bf16.msra.mxu0 %v494
    %673 = vmatprep.subr.bf16.mxu0 0
    %674 = vmatpush1.bf16.msra.mxu0 %v495
    %675 = vmatprep.subr.bf16.mxu0 0
    %676 = vmatpush1.bf16.msra.mxu0 %v496
    %677 = vmatprep.subr.bf16.mxu0 0
    %678 = vmatpush1.bf16.msra.mxu0 %v497
    %679 = vmatprep.subr.bf16.mxu0 0
    %680 = vmatpush1.bf16.msra.mxu0 %v498
    %681 = vmatprep.subr.bf16.mxu0 0
    %682 = vmatpush1.bf16.msra.mxu0 %v499
    %683 = vmatprep.subr.bf16.mxu0 0
    %684 = vmatpush1.bf16.msra.mxu0 %v500
    %685 = vmatprep.subr.bf16.mxu0 0
    %686 = vmatpush1.bf16.msra.mxu0 %v501
    %687 = vmatprep.subr.bf16.mxu0 0
    %688 = vmatpush1.bf16.msra.mxu0 %v502
    %689 = vmatprep.subr.bf16.mxu0 0
    %690 = vmatpush1.bf16.msra.mxu0 %v503
    %691 = vmatprep.subr.bf16.mxu0 0
    %692 = vmatpush1.bf16.msra.mxu0 %v504
    %693 = vmatprep.subr.bf16.mxu0 0
    %694 = vmatpush1.bf16.msra.mxu0 %v505
    %695 = vmatprep.subr.bf16.mxu0 0
    %696 = vmatpush1.bf16.msra.mxu0 %v506
    %697 = vmatprep.subr.bf16.mxu0 0
    %698 = vmatpush1.bf16.msra.mxu0 %v507
    %699 = vmatprep.subr.bf16.mxu0 0
    %700 = vmatpush1.bf16.msra.mxu0 %v508
    %701 = vmatprep.mubr.bf16.mxu0 %v194
    %702 = vmatmul.mubr.bf16.gmra.mrb[0].mxu0 %v193
    %v703 = vpop.f32.mrb[0].mxu0
    %v704 = vadd.f32 %v664, %v703
    %v705 = vpop.f32.mrb[0].mxu0
    %v706 = vpop.f32.mrb[0].mxu0
    %v707 = vpop.f32.mrb[0].mxu0
    %708 = vdwg.mxu0
    %709 = vmatprep.subr.bf16.mxu0 0
    %710 = vmatpush1.bf16.msra.mxu0 %v509
    %711 = vmatprep.subr.bf16.mxu0 0
    %712 = vmatpush1.bf16.msra.mxu0 %v510
    %713 = vmatprep.subr.bf16.mxu0 0
    %714 = vmatpush1.bf16.msra.mxu0 %v511
    %715 = vmatprep.subr.bf16.mxu0 0
    %716 = vmatpush1.bf16.msra.mxu0 %v512
    %717 = vmatprep.subr.bf16.mxu0 0
    %718 = vmatpush1.bf16.msra.mxu0 %v513
    %719 = vmatprep.subr.bf16.mxu0 0
    %720 = vmatpush1.bf16.msra.mxu0 %v514
    %721 = vmatprep.subr.bf16.mxu0 0
    %722 = vmatpush1.bf16.msra.mxu0 %v515
    %723 = vmatprep.subr.bf16.mxu0 0
    %724 = vmatpush1.bf16.msra.mxu0 %v516
    %725 = vmatprep.subr.bf16.mxu0 0
    %726 = vmatpush1.bf16.msra.mxu0 %v517
    %727 = vmatprep.subr.bf16.mxu0 0
    %728 = vmatpush1.bf16.msra.mxu0 %v518
    %729 = vmatprep.subr.bf16.mxu0 0
    %730 = vmatpush1.bf16.msra.mxu0 %v519
    %731 = vmatprep.subr.bf16.mxu0 0
    %732 = vmatpush1.bf16.msra.mxu0 %v520
    %733 = vmatprep.subr.bf16.mxu0 0
    %734 = vmatpush1.bf16.msra.mxu0 %v521
    %735 = vmatprep.subr.bf16.mxu0 0
    %736 = vmatpush1.bf16.msra.mxu0 %v522
    %737 = vmatprep.subr.bf16.mxu0 0
    %738 = vmatpush1.bf16.msra.mxu0 %v523
    %739 = vmatprep.subr.bf16.mxu0 0
    %740 = vmatpush1.bf16.msra.mxu0 %v524
    %741 = vmatprep.mubr.bf16.mxu0 %v196
    %742 = vmatmul.mubr.bf16.gmra.mrb[0].mxu0 %v195
    %v743 = vpop.f32.mrb[0].mxu0
    %v744 = vadd.f32 %v704, %v743
    %v745 = vpop.f32.mrb[0].mxu0
    %v746 = vpop.f32.mrb[0].mxu0
    %v747 = vpop.f32.mrb[0].mxu0
    %748 = vdwg.mxu0
    %v749 = vadd.f32 %v44, %v744
    %750 = vst [vmem:[#allocation2] sm:$0xff] %v749
    // Predicated region
    $region22: #{tpu_custom_call.1} parent=1 // pred_check
      %p751 = pneg %p39
    $region23: #{tpu_custom_call.1} parent=1 // pred_check_branch
      %753 = sbr.rel (%p751) target = $region25
    $region24: #{tpu_custom_call.1} parent=1 // pred_region
      %v754 = vld [vmem:[#allocation2] sm:$0xff]
      %v755 = vpack.c.bf16 %v754, %v754
      %756 = vst [vmem:[#allocation8] sm:$0xf] %v755
    $region25: #{tpu_custom_call.1} parent=1 // pred_fallthru
      _
    // Predicated region
    $region26: #{tpu_custom_call.1} parent=1 // pred_check
      _
    $region27: #{tpu_custom_call.1} parent=1 // pred_check_branch
      %758 = sbr.rel (0) target = $region29
    $region28: #{tpu_custom_call.1} parent=1 // pred_region
      %s760 = ssub.s32 64, 64
      %761 = vsyncadd [#allocation5], %s760
      %s763 = sshll.u32 [#allocation8], 4
      %s764 = int_to_ptr.vmem [resolvable:$true] %s763
      %766 = dma.vmem_to_hbm [thread:$0]  %s764, 64, %s2, [#allocation5]
    $region29: #{tpu_custom_call.1} parent=1 // pred_fallthru
      _
    // Predicated region
    $region30: #{tpu_custom_call.1} parent=1 // pred_check
      _
    $region31: #{tpu_custom_call.1} parent=1 // pred_check_branch
      %768 = sbr.rel (0) target = $region33
    $region32: #{tpu_custom_call.1} parent=1 // pred_region
      %769 = dma.done [#allocation5], 64
    $region33: #{tpu_custom_call.1} parent=1 // pred_fallthru
      _
    %770 = vsyncpa [#allocation4], 1
    %771 = vsyncpa [#allocation7], 1
    %772 = vsyncpa [#allocation5], 1

</llo_original>
